<compile_context>
chip_gen: v5e
topology: v5e:2x2
jax: 0.10.0
libtpu: 0.0.40
codegen_flags: <defaults>
</compile_context>

<pallas_src>
import functools

import jax
import jax.numpy as jnp
import numpy as np
from jax.experimental import pallas as pl
from jax.experimental.pallas import tpu as pltpu


def _round_up(a, b):
    return (a + b - 1) // b * b


def _causal_conv_kernel(x_ref, w_ref, o_ref, halo_ref, *,
                        kernel_size, dilation, t_tile, compute_dtype, fuse_taps):
    """One (batch, time-tile) grid point of the dilated causal conv.

    x_ref:    (1, C_in, tT)     current input time tile (right-zero-padded on last tile)
    w_ref:    (C_out, K*C_in)   fused lane-dense weight         [fuse_taps=True]
              (K, C_out, C_in)  per-tap weight                  [fuse_taps=False]
    o_ref:    (1, C_out, tT)
    halo_ref: (C_in, pad)       VMEM scratch carrying the pad=(K-1)*dilation input columns
                                immediately preceding this tile (compute dtype).

    y[o, t] = sum_{j, c} W[o, c, j] * x[c, t - (K-1-j)*dilation]   (zeros for t < 0)
    """
    pad = (kernel_size - 1) * dilation

    @pl.when(pl.program_id(1) == 0)
    def _():
        halo_ref[...] = jnp.zeros_like(halo_ref)

    x = x_ref[0].astype(compute_dtype)                 # (C_in, tT)
    h = halo_ref[...]                                  # (C_in, pad)

    # Shifted per-tap operands; tap j = K-1 needs no shift and reuses x directly.
    parts = []
    for j in range(kernel_size):
        shift = pad - j * dilation
        if shift == 0:
            parts.append(x)
        elif shift >= t_tile:                          # only possible when pad == t_tile
            parts.append(h[:, j * dilation: j * dilation + t_tile])
        else:
            parts.append(jnp.concatenate(
                [h[:, j * dilation:], x[:, : t_tile - shift]], axis=-1))

    if fuse_taps:
        # Small C_in: one MXU pass with contraction K*C_in.
        xs = jnp.concatenate(parts, axis=0)            # (K*C_in, tT)
        acc = jnp.dot(w_ref[...], xs, preferred_element_type=jnp.float32)
    else:
        # Large C_in: per-tap accumulation (no sublane-concat im2col copy).
        acc = jnp.dot(w_ref[0], parts[0], preferred_element_type=jnp.float32)
        for j in range(1, kernel_size):
            acc = acc + jnp.dot(w_ref[j], parts[j], preferred_element_type=jnp.float32)

    o_ref[0] = acc.astype(o_ref.dtype)

    # Carry this tile's trailing `pad` input columns to the next time tile.
    halo_ref[...] = x[:, t_tile - pad:]


def _pointwise_kernel(x_ref, w_ref, o_ref, *, compute_dtype):
    # kernel_size == 1: plain channel-mixing matmul, no causal padding.
    o_ref[0] = jnp.dot(
        w_ref[...], x_ref[0].astype(compute_dtype),
        preferred_element_type=jnp.float32,
    ).astype(o_ref.dtype)


def dilated_causal_conv1d(x, w, *, dilation, time_tile=512, compute_dtype=jnp.bfloat16):
    """x: (B, C_in, T), w: (C_out, C_in, K) -> (B, C_out, T).  bias=False, stride=1.

    compute_dtype is the dtype of the MXU matmul operands (accumulation is always f32).
    bf16 (default) is the fast v6e/v7x-native path; pass jnp.float32 (or None) to match
    the PyTorch f32 forward up to summation order.
    """
    b, c_in, t_len = x.shape
    c_out, c_in_w, k = w.shape
    assert c_in == c_in_w
    pad = (k - 1) * dilation
    cd = jnp.dtype(x.dtype) if compute_dtype is None else jnp.dtype(compute_dtype)
    fuse_taps = c_in < 128   # sublane-concat im2col only pays off for small channel counts

    # --- time tiling: lane-dense multiples of 128, at least the causal halo width ---
    t_tile = min(_round_up(max(time_tile, 128), 128), _round_up(t_len, 128))
    if pad > 0:
        t_tile = max(t_tile, _round_up(pad, 128))      # halo carry needs pad <= t_tile
    t_min = _round_up(max(pad, 128), 128)

    in_isz = jnp.dtype(x.dtype).itemsize
    cd_isz = cd.itemsize

    def _vmem_est(tt):
        # double-buffered x / out blocks + (double-allocated) resident weight
        blocks = (2 * _round_up(c_in, 8) * tt * in_isz
                  + 2 * _round_up(c_out, 8) * tt * in_isz
                  + 2 * _round_up(c_out, 8) * _round_up(k * c_in, 128) * cd_isz)
        # halo scratch + in-kernel temporaries (cast tile, shifted parts, im2col, f32 acc)
        scratch = _round_up(c_in, 8) * _round_up(max(pad, 1), 128) * cd_isz
        temps = ((k + 1) * _round_up(c_in, 8) * tt * cd_isz
                 + (_round_up(k * c_in, 8) * tt * cd_isz if fuse_taps else 0)
                 + _round_up(c_out, 8) * tt * 4)
        return blocks + scratch + temps

    # Back off the tile until the working set keeps double-buffering alive even within
    # v7x's 64 MiB physical VMEM (and well above the 16/32 MiB scoped defaults).
    while t_tile - 128 >= t_min and _vmem_est(t_tile) > 40 * 2**20:
        t_tile -= 128
    vmem_limit = int(min(max(2 * _vmem_est(t_tile), 32 * 2**20), 100 * 2**20))

    t_up = _round_up(t_len, t_tile)
    n_t = t_up // t_tile
    x_main = jnp.pad(x, ((0, 0), (0, 0), (0, t_up - t_len))) if t_up > t_len else x

    cost = pl.CostEstimate(
        flops=2 * b * c_out * c_in * k * t_up,
        transcendentals=0,
        bytes_accessed=(x_main.size + b * c_out * t_up) * in_isz + w.size * cd_isz,
    )

    if pad == 0:
        w2 = w.reshape(c_out, c_in).astype(cd)
        out = pl.pallas_call(
            functools.partial(_pointwise_kernel, compute_dtype=cd),
            out_shape=jax.ShapeDtypeStruct((b, c_out, t_up), x.dtype),
            grid=(b, n_t),
            in_specs=[
                pl.BlockSpec((1, c_in, t_tile), lambda i, t: (i, 0, t)),
                pl.BlockSpec((c_out, c_in), lambda i, t: (0, 0)),
            ],
            out_specs=pl.BlockSpec((1, c_out, t_tile), lambda i, t: (i, 0, t)),
            compiler_params=pltpu.CompilerParams(
                dimension_semantics=("parallel", "parallel"),
                vmem_limit_bytes=vmem_limit),
            cost_estimate=cost,
        )(x_main, w2)
        return out[:, :, :t_len]

    if fuse_taps:
        # Fused lane-dense weight: W2[o, j*C_in + c] = W[o, c, j].
        w_arg = jnp.transpose(w, (0, 2, 1)).reshape(c_out, k * c_in).astype(cd)
        w_spec = pl.BlockSpec((c_out, k * c_in), lambda i, t: (0, 0))
    else:
        # Per-tap weight: W3[j, o, c] = W[o, c, j].
        w_arg = jnp.transpose(w, (2, 0, 1)).astype(cd)
        w_spec = pl.BlockSpec((k, c_out, c_in), lambda i, t: (0, 0, 0))

    kernel = functools.partial(
        _causal_conv_kernel, kernel_size=k, dilation=dilation, t_tile=t_tile,
        compute_dtype=cd, fuse_taps=fuse_taps)

    out = pl.pallas_call(
        kernel,
        out_shape=jax.ShapeDtypeStruct((b, c_out, t_up), x.dtype),
        grid=(b, n_t),
        in_specs=[
            pl.BlockSpec((1, c_in, t_tile), lambda i, t: (i, 0, t)),
            w_spec,
        ],
        out_specs=pl.BlockSpec((1, c_out, t_tile), lambda i, t: (i, 0, t)),
        scratch_shapes=[pltpu.VMEM((c_in, pad), cd)],
        compiler_params=pltpu.CompilerParams(
            # time axis carries the causal-halo scratch -> must run in order;
            # batch stays "parallel" (megacore sharding on v7x when B >= 2).
            dimension_semantics=("parallel", "arbitrary"),
            vmem_limit_bytes=vmem_limit),
        cost_estimate=cost,
    )(x_main, w_arg)
    return out[:, :, :t_len]


def _ref_dilated_causal_conv1d(x, w, *, dilation):
    """Pure-JAX reference mirroring the PyTorch module exactly (high-precision conv)."""
    k = w.shape[-1]
    pad = (k - 1) * dilation
    y = jax.lax.conv_general_dilated(
        x, w, window_strides=(1,), padding=[(pad, pad)], rhs_dilation=(dilation,),
        dimension_numbers=("NCH", "OIH", "NCH"), precision=jax.lax.Precision.HIGHEST)
    if pad:
        y = y[:, :, :-pad]
    return y


if __name__ == "__main__":
    key = jax.random.PRNGKey(0)
    kx1, kw1, kx2, kw2, kx3, kw3, kx4, kw4 = jax.random.split(key, 8)

    # Case 1: module-sized shapes, exact-f32 compute path, single time tile.
    B, C_IN, C_OUT, T, K, D = 2, 4, 4, 16, 2, 2
    x1 = jax.random.normal(kx1, (B, C_IN, T), dtype=jnp.float32)
    w1 = jax.random.normal(kw1, (C_OUT, C_IN, K), dtype=jnp.float32) * 0.1
    out1 = jax.block_until_ready(
        dilated_causal_conv1d(x1, w1, dilation=D, compute_dtype=jnp.float32))
    ref1 = _ref_dilated_causal_conv1d(x1, w1, dilation=D)
    np.testing.assert_allclose(np.asarray(out1), np.asarray(ref1), rtol=1e-4, atol=1e-5)

    # Case 2: multi-tile time axis (cross-tile causal-halo carry), default bf16 MXU path.
    B2, C2_IN, C2_OUT, T2, K2, D2 = 2, 8, 8, 384, 2, 4
    x2 = jax.random.normal(kx2, (B2, C2_IN, T2), dtype=jnp.float32)
    w2 = jax.random.normal(kw2, (C2_OUT, C2_IN, K2), dtype=jnp.float32) * 0.1
    out2 = jax.block_until_ready(
        dilated_causal_conv1d(x2, w2, dilation=D2, time_tile=128))
    ref2 = _ref_dilated_causal_conv1d(x2, w2, dilation=D2)
    np.testing.assert_allclose(np.asarray(out2), np.asarray(ref2), rtol=3e-2, atol=3e-2)

    # Case 3: C_in >= 128 exercises the per-tap accumulation path (no im2col concat).
    B3, C3_IN, C3_OUT, T3, K3, D3 = 1, 128, 128, 256, 2, 8
    x3 = jax.random.normal(kx3, (B3, C3_IN, T3), dtype=jnp.float32)
    w3 = jax.random.normal(kw3, (C3_OUT, C3_IN, K3), dtype=jnp.float32) * 0.1
    out3 = jax.block_until_ready(
        dilated_causal_conv1d(x3, w3, dilation=D3, time_tile=128,
                              compute_dtype=jnp.float32))
    ref3 = _ref_dilated_causal_conv1d(x3, w3, dilation=D3)
    np.testing.assert_allclose(np.asarray(out3), np.asarray(ref3), rtol=1e-4, atol=1e-5)

    # Case 4: kernel_size == 1 (padding == 0) pointwise branch of the module.
    B4, C4_IN, C4_OUT, T4 = 2, 4, 8, 16
    x4 = jax.random.normal(kx4, (B4, C4_IN, T4), dtype=jnp.float32)
    w4 = jax.random.normal(kw4, (C4_OUT, C4_IN, 1), dtype=jnp.float32) * 0.1
    out4 = jax.block_until_ready(
        dilated_causal_conv1d(x4, w4, dilation=1, compute_dtype=jnp.float32))
    ref4 = _ref_dilated_causal_conv1d(x4, w4, dilation=1)
    np.testing.assert_allclose(np.asarray(out4), np.asarray(ref4), rtol=1e-4, atol=1e-5)

    print("KERNEL_OK")
</pallas_src>

<mosaic_0001>
module attributes {stable_mosaic.version = 11 : i64} {
  func.func @_causal_conv_kernel(%arg0: i32, %arg1: i32, %arg2: memref<1x4x128xf32, #tpu.memory_space<vmem>>, %arg3: memref<4x8xf32, #tpu.memory_space<vmem>>, %arg4: memref<1x4x128xf32, #tpu.memory_space<vmem>>, %arg5: memref<4x2xf32, #tpu.memory_space<vmem>>) attributes {dimension_semantics = [#tpu.dimension_semantics<parallel>, #tpu.dimension_semantics<arbitrary>], iteration_bounds = array<i64: 2, 1>, scalar_prefetch = 0 : i64, scratch_operands = 1 : i64, tpu.core_type = #tpu.core_type<tc>, window_params = [{transform_indices = @transform_0, window_bounds = array<i64: 1, 4, 128>}, {pipeline_mode = #tpu.pipeline_mode<synchronous>, transform_indices = @transform_1, window_bounds = array<i64: 4, 8>}, {transform_indices = @transform_2, window_bounds = array<i64: 1, 4, 128>}]} {
    %c0_i32 = arith.constant 0 : i32
    %0 = arith.cmpi eq, %arg1, %c0_i32 : i32
    %1 = arith.extui %0 : i1 to i32
    %c0_i32_0 = arith.constant 0 : i32
    %2 = arith.cmpi ne, %1, %c0_i32_0 : i32
    scf.if %2 {
      %cst_12 = arith.constant 0.000000e+00 : f32
      %16 = vector.broadcast %cst_12 : f32 to vector<4x2xf32>
      %c0_13 = arith.constant 0 : index
      %c0_14 = arith.constant 0 : index
      %17 = vector.load %arg5[%c0_13, %c0_14] : memref<4x2xf32, #tpu.memory_space<vmem>>, vector<4x2xf32>
      tpu.vector_store %arg5[%c0_13, %c0_14], %16 {strides = array<i32>} : memref<4x2xf32, #tpu.memory_space<vmem>>, vector<4x2xf32>,
    } else {
    }
    %c0 = arith.constant 0 : index
    %c0_1 = arith.constant 0 : index
    %c0_2 = arith.constant 0 : index
    %3 = vector.load %arg2[%c0, %c0_1, %c0_2] : memref<1x4x128xf32, #tpu.memory_space<vmem>>, vector<1x4x128xf32>
    %4 = vector.shape_cast %3 : vector<1x4x128xf32> to vector<4x128xf32>
    %c0_3 = arith.constant 0 : index
    %c0_4 = arith.constant 0 : index
    %5 = vector.load %arg5[%c0_3, %c0_4] : memref<4x2xf32, #tpu.memory_space<vmem>>, vector<4x2xf32>
    %6 = vector.extract_strided_slice %4 {offsets = [0, 0], sizes = [4, 126], strides = [1, 1]} : vector<4x128xf32> to vector<4x126xf32>
    %7 = tpu.concatenate %5, %6 in 1 : vector<4x2xf32>, vector<4x126xf32> -> vector<4x128xf32>
    %8 = tpu.concatenate %7, %4 in 0 : vector<4x128xf32>, vector<4x128xf32> -> vector<8x128xf32>
    %c0_5 = arith.constant 0 : index
    %c0_6 = arith.constant 0 : index
    %9 = vector.load %arg3[%c0_5, %c0_6] : memref<4x8xf32, #tpu.memory_space<vmem>>, vector<4x8xf32>
    %cst = arith.constant dense<0.000000e+00> : vector<4x128xf32>
    %10 = tpu.matmul %9, %8, %cst {dimension_numbers = #tpu.dot_dimension_numbers<[1], [0], [0], [1], [0, 0, 1, 1], [], []>} : vector<4x8xf32>, vector<8x128xf32>, vector<4x128xf32> -> vector<4x128xf32>
    %c0_7 = arith.constant 0 : index
    %c0_8 = arith.constant 0 : index
    %c0_9 = arith.constant 0 : index
    %11 = vector.load %arg4[%c0_7, %c0_8, %c0_9] : memref<1x4x128xf32, #tpu.memory_space<vmem>>, vector<1x4x128xf32>
    %12 = vector.shape_cast %11 : vector<1x4x128xf32> to vector<4x128xf32>
    %13 = vector.shape_cast %10 : vector<4x128xf32> to vector<1x4x128xf32>
    tpu.vector_store %arg4[%c0_7, %c0_8, %c0_9], %13 {strides = array<i32>} : memref<1x4x128xf32, #tpu.memory_space<vmem>>, vector<1x4x128xf32>,
    %14 = vector.extract_strided_slice %4 {offsets = [0, 126], sizes = [4, 2], strides = [1, 1]} : vector<4x128xf32> to vector<4x2xf32>
    %c0_10 = arith.constant 0 : index
    %c0_11 = arith.constant 0 : index
    %15 = vector.load %arg5[%c0_10, %c0_11] : memref<4x2xf32, #tpu.memory_space<vmem>>, vector<4x2xf32>
    tpu.vector_store %arg5[%c0_10, %c0_11], %14 {strides = array<i32>} : memref<4x2xf32, #tpu.memory_space<vmem>>, vector<4x2xf32>,
    return
  }
  func.func @transform_0(%arg0: i32, %arg1: i32) -> (i32, i32, i32) {
    %c0_i32 = arith.constant 0 : i32
    %c0_i32_0 = arith.constant 0 : i32
    return %arg0, %c0_i32, %arg1 : i32, i32, i32
  }
  func.func @transform_1(%arg0: i32, %arg1: i32) -> (i32, i32) {
    %c0_i32 = arith.constant 0 : i32
    %c0_i32_0 = arith.constant 0 : i32
    %c0_i32_1 = arith.constant 0 : i32
    return %c0_i32, %c0_i32_0 : i32, i32
  }
  func.func @transform_2(%arg0: i32, %arg1: i32) -> (i32, i32, i32) {
    %c0_i32 = arith.constant 0 : i32
    %c0_i32_0 = arith.constant 0 : i32
    return %arg0, %c0_i32, %arg1 : i32, i32, i32
  }
}

</mosaic_0001>

<llo_original>
// kernel: tpu_custom_call.1
$region0: #{tpu_custom_call.1}
  #allocation0 [shape = 'u32[]', space=smem, size = 0x4, offset = 0x4, fixed_abs, tag = 'smem constant byte address 0x4 - core index']
  #allocation1 [shape = 'u32[72,128]{1,0:T(1,128)}', space=vmem, size = 0x9000, scoped, tag = 'internal scratch']
  #allocation2 [shape = 'f32[4,2]{1,0:T(4,128)}', space=vmem, size = 0x800, scoped, tag = 'scratch operand']
  %s0 = inlined_call_operand.hbm [shape: f32[2,4,128], index: 0, kind: input, shape index: {}]
  %s1 = inlined_call_operand.hbm [shape: f32[4,8], index: 1, kind: input, shape index: {}]
  %s2 = inlined_call_operand.hbm [shape: f32[2,4,128], index: 2, kind: output, shape index: {}]
  %s3 = sld [smem:[#allocation0]]
  $region53: #{tpu_custom_call.1} parent=0
    _
  %s5 = ssub.s32 1, %s3
  %s6 = scalar_select 0, %s5, %s3
  $region1: #{tpu_custom_call.1} parent=0
    #allocation3 [shape = 'u8[4096]{0}', space=vmem, size = 0x1000, scoped, tag = 'input window, operand 0']
    #allocation4 [shape = 's32[2]{0}', space=sflag, size = 0x8, scoped, tag = 'scoped memory for tpu_custom_call.1']
    #allocation5 [shape = 's32[2]{0}', space=sflag, size = 0x8, scoped, tag = 'scoped memory for tpu_custom_call.1']
    #allocation6 [shape = 'u8[2048]{0}', space=vmem, size = 0x800, scoped, tag = 'input window, operand 1, single buffered']
    #allocation7 [shape = 's32[1]{0}', space=sflag, size = 0x4, scoped, tag = 'scoped memory for tpu_custom_call.1']
    #allocation8 [shape = 'u8[4096]{0}', space=vmem, size = 0x1000, scoped, tag = 'output window, operand 0']
    %7 = vsyncpa [#allocation4], 0
    %s8 = scalar_lea.sflag [#allocation4], 1
    %9 = vsyncpa %s8, 0
    %10 = vsyncpa [#allocation7], 0
    %11 = vsyncpa [#allocation5], 0
    %s12 = scalar_lea.sflag [#allocation5], 1
    %13 = vsyncpa %s12, 0
    loop: start=0, step=1, limit=4
    $region2: #{tpu_custom_call.1} parent=1 // loop_pre_header
      _
    $region3: #{tpu_custom_call.1} parent=1 // loop_header
      %s15 = sphi 0, %s19
      %p16 = scmp.ge.s32.totalorder %s15, 4
      %s22 = sphi 0, %s34
      %s23 = sphi 0, %s30
      %s24 = sphi 0, %s22
      %s25 = sphi 0, %s23
      %s26 = sphi 0, %s24
      %s27 = sphi 0, %s25
      %s39 = sphi 0, %s41
      %s42 = sphi 0, %s39
      %s43 = sphi 0, %s42
      %s59 = sphi 0, %s43
      %s63 = sphi 0, %s63
      %s65 = sphi 0, %s63
      %s66 = sphi 0, %s65
      %s80 = sphi 0, %s66
      %s88 = sphi 0, %s90
      %s91 = sphi 0, %s88
      %s92 = sphi 0, %s91
      %s108 = sphi 0, %s92
    $region4: #{tpu_custom_call.1} parent=1 // loop_header_branch
      %18 = sbr.rel (%p16) target = $region8
    $region5: #{tpu_custom_call.1} parent=1 // loop_body
      %s20 = ssub.s32 %s15, 1
      %s21 = ssub.s32 %s15, 2
      %s28 = sadd.s32 1, %s23
      %p29 = scmp.ge.s32.totalorder %s28, 1
      %s30 = scalar_select %p29, 0, %s28
      %s31 = sadd.s32 1, %s22
      %s32 = scalar_select %p29, %s31, %s22
      %p33 = scmp.ge.s32.totalorder %s32, 2
      %s34 = scalar_select %p33, 0, %s32
      %s35 = ssub.s32 %s22, %s34
      %s36 = ssub.s32 %s23, %s30
      %s37 = sor.u32 %s35, %s36
      %p38 = scmp.eq.s32.totalorder %s37, 0
      %s40 = sadd.s32 %s39, 1
      %s41 = scalar_select %p38, %s39, %s40
      %p44 = pneg %p38
      %p45 = scmp.eq.s32.totalorder %s15, 1
      %p46 = por %p44, %p45
      %p47 = scmp.ne.s32.totalorder %s39, %s42
      %p48 = scmp.eq.s32.totalorder %s15, 0
      %p49 = por %p47, %p48
      %p50 = scmp.ne.s32.totalorder %s39, %s42
      %p51 = scmp.eq.s32.totalorder %s20, 1
      %p52 = por %p50, %p51
      %p53 = scmp.ne.s32.totalorder %s42, %s43
      %p54 = scmp.eq.s32.totalorder %s20, 0
      %p55 = por %p53, %p54
      %p56 = scmp.ne.s32.totalorder %s42, %s43
      %p57 = scmp.eq.s32.totalorder %s21, 1
      %p58 = por %p56, %p57
      %p60 = scmp.ne.s32.totalorder %s43, %s59
      %p61 = scmp.eq.s32.totalorder %s21, 0
      %p62 = por %p60, %p61
      %s64 = sadd.s32 %s63, 1
      %p67 = scmp.eq.s32.totalorder %s15, 1
      %p68 = scmp.ne.s32.totalorder %s63, %s65
      %p69 = scmp.eq.s32.totalorder %s15, 0
      %p70 = por %p68, %p69
      %p71 = scmp.ne.s32.totalorder %s63, %s65
      %p72 = scmp.eq.s32.totalorder %s20, 1
      %p73 = por %p71, %p72
      %p74 = scmp.ne.s32.totalorder %s65, %s66
      %p75 = scmp.eq.s32.totalorder %s20, 0
      %p76 = por %p74, %p75
      %p77 = scmp.ne.s32.totalorder %s65, %s66
      %p78 = scmp.eq.s32.totalorder %s21, 1
      %p79 = por %p77, %p78
      %p81 = scmp.ne.s32.totalorder %s66, %s80
      %p82 = scmp.eq.s32.totalorder %s21, 0
      %p83 = por %p81, %p82
      %s84 = ssub.s32 %s22, %s34
      %s85 = ssub.s32 %s23, %s30
      %s86 = sor.u32 %s84, %s85
      %p87 = scmp.eq.s32.totalorder %s86, 0
      %s89 = sadd.s32 %s88, 1
      %s90 = scalar_select %p87, %s88, %s89
      %p93 = pneg %p87
      %p94 = scmp.eq.s32.totalorder %s15, 1
      %p95 = por %p93, %p94
      %p96 = scmp.ne.s32.totalorder %s88, %s91
      %p97 = scmp.eq.s32.totalorder %s15, 0
      %p98 = por %p96, %p97
      %p99 = scmp.ne.s32.totalorder %s88, %s91
      %p100 = scmp.eq.s32.totalorder %s20, 1
      %p101 = por %p99, %p100
      %p102 = scmp.ne.s32.totalorder %s91, %s92
      %p103 = scmp.eq.s32.totalorder %s20, 0
      %p104 = por %p102, %p103
      %p105 = scmp.ne.s32.totalorder %s91, %s92
      %p106 = scmp.eq.s32.totalorder %s21, 1
      %p107 = por %p105, %p106
      %p109 = scmp.ne.s32.totalorder %s92, %s108
      %p110 = scmp.eq.s32.totalorder %s21, 0
      %p111 = por %p109, %p110
      %p112 = scmp.le.s32.totalorder 1, %s15
      %p113 = scmp.lt.s32.totalorder %s15, 3
      %p114 = pnand %p112, %p113
      %p115 = pneg %p114
      // Predicated region
      $region9: #{tpu_custom_call.1} parent=5 // pred_check
        _
      $region10: #{tpu_custom_call.1} parent=5 // pred_check_branch
        %117 = sbr.rel (%p114) target = $region12
      $region11: #{tpu_custom_call.1} parent=5 // pred_region
        %s118 = ssub.s32 %s15, 1
        // Predicated region
        $region13: #{tpu_custom_call.1} parent=11 // pred_check
          %p119 = pneg %p76
        $region14: #{tpu_custom_call.1} parent=11 // pred_check_branch
          %121 = sbr.rel (%p119) target = $region16
        $region15: #{tpu_custom_call.1} parent=11 // pred_region
          %123 = vsyncadd [#allocation7], 0
          %s125 = sshll.u32 %s1, 4
          %s126 = int_to_ptr.hbm [resolvable:$true] %s125
          %s127 = sshll.u32 [#allocation6], 4
          %s128 = int_to_ptr.vmem [resolvable:$true] %s127
          %130 = dma.hbm_to_vmem [thread:$0]  %s126, 64, %s128, [#allocation7]
        $region16: #{tpu_custom_call.1} parent=11 // pred_fallthru
          _
      $region12: #{tpu_custom_call.1} parent=5 // pred_fallthru
        _
      %p131 = scmp.lt.s32.totalorder %s15, 2
      // Predicated region
      $region17: #{tpu_custom_call.1} parent=5 // pred_check
        %p132 = pneg %p131
      $region18: #{tpu_custom_call.1} parent=5 // pred_check_branch
        %134 = sbr.rel (%p132) target = $region20
      $region19: #{tpu_custom_call.1} parent=5 // pred_region
        // Predicated region
        $region21: #{tpu_custom_call.1} parent=19 // pred_check
          %p135 = pneg %p49
        $region22: #{tpu_custom_call.1} parent=19 // pred_check_branch
          %137 = sbr.rel (%p135) target = $region24
        $region23: #{tpu_custom_call.1} parent=19 // pred_region
          %s138 = sand.u32 %s39, 1
          %s139 = scalar_lea.sflag [#allocation4], %s138
          %s140 = sand.u32 %s39, 1
          %s141 = smul.addr %s140, 4
          %s142 = scalar_lea.vmem [#allocation3], %s141
          %144 = vsyncadd %s139, 0
          %s145 = sadd.s32 %s23, %s22
          %s146 = smul.addr %s145, 4
          %s147 = scalar_lea.hbm %s0, %s146
          %s149 = sshll.u32 %s147, 4
          %s150 = int_to_ptr.hbm [resolvable:$true] %s149
          %s151 = sshll.u32 %s142, 4
          %s152 = int_to_ptr.vmem [resolvable:$true] %s151
          %154 = dma.hbm_to_vmem [thread:$0]  %s150, 64, %s152, %s139
        $region24: #{tpu_custom_call.1} parent=19 // pred_fallthru
          _
      $region20: #{tpu_custom_call.1} parent=5 // pred_fallthru
        _
      %p155 = scmp.le.s32.totalorder 1, %s15
      %p156 = scmp.lt.s32.totalorder %s15, 3
      %p157 = pnand %p155, %p156
      %p158 = pneg %p157
      // Predicated region
      $region25: #{tpu_custom_call.1} parent=5 // pred_check
        _
      $region26: #{tpu_custom_call.1} parent=5 // pred_check_branch
        %160 = sbr.rel (%p157) target = $region28
      $region27: #{tpu_custom_call.1} parent=5 // pred_region
        %s161 = ssub.s32 %s15, 1
        %s162 = sand.u32 %s42, 1
        %s163 = scalar_lea.sflag [#allocation4], %s162
        %s164 = sand.u32 %s42, 1
        %s165 = smul.addr %s164, 4
        %s166 = scalar_lea.vmem [#allocation3], %s165
        // Predicated region
        $region29: #{tpu_custom_call.1} parent=27 // pred_check
          %p167 = pneg %p55
        $region30: #{tpu_custom_call.1} parent=27 // pred_check_branch
          %169 = sbr.rel (%p167) target = $region32
        $region31: #{tpu_custom_call.1} parent=27 // pred_region
          %171 = dma.done %s163, 64
        $region32: #{tpu_custom_call.1} parent=27 // pred_fallthru
          _
        // Predicated region
        $region33: #{tpu_custom_call.1} parent=27 // pred_check
          %p172 = pneg %p76
        $region34: #{tpu_custom_call.1} parent=27 // pred_check_branch
          %174 = sbr.rel (%p172) target = $region36
        $region35: #{tpu_custom_call.1} parent=27 // pred_region
          %176 = dma.done [#allocation7], 64
        $region36: #{tpu_custom_call.1} parent=27 // pred_fallthru
          _
        %s177 = sand.u32 %s42, 1
        %s178 = scalar_lea.sflag [#allocation4], %s177
        %s179 = sand.u32 %s42, 1
        %s180 = smul.addr %s179, 4
        %s181 = scalar_lea.vmem [#allocation3], %s180
        %p182 = pneg %p55
        %p183 = pneg %p52
        %p184 = pneg %p76
        %p185 = pneg %p73
        %p186 = pneg %p104
        %p187 = pneg %p101
        %s188 = sand.u32 %s91, 1
        %s189 = scalar_lea.sflag [#allocation5], %s188
        %s190 = sand.u32 %s91, 1
        %s191 = smul.addr %s190, 4
        %s192 = scalar_lea.vmem [#allocation8], %s191
        %p193 = scmp.eq.s32.totalorder %s25, 0
        // Predicated region
        $region37: #{tpu_custom_call.1} parent=27 // pred_check
          %p194 = pneg %p193
        $region38: #{tpu_custom_call.1} parent=27 // pred_check_branch
          %196 = sbr.rel (%p194) target = $region40
        $region39: #{tpu_custom_call.1} parent=27 // pred_region
          %vm197 = vcmask 11264
          %198 = vst.msk [vmem:[#allocation2] sm:$0xf] %vm197, 0.0
        $region40: #{tpu_custom_call.1} parent=27 // pred_fallthru
          _
        %v199 = vld [vmem:[%s166] sm:$0xf]
        %v200 = vld [vmem:[#allocation2] sm:$0xf]
        %202 = vrot.lane.b32.xlu0 %v199, 2
        %v203 = vpop.permute.xlu0 %202
        %vm205 = vcmask 15360
        %v206 = vsel %vm205, %v200, %v203
        %v207 = vrot.slane %v199, 4
        %vm209 = vcmask 1043456
        %v210 = vsel %vm209, %v206, %v207
        %v211 = vld [vmem:[#allocation6] sm:$0xf]
        %vm212 = vcmask 64512
        %v214 = vsel %vm212, %v211, 0
        %216 = vmatpush.msra.mxu0 0.0
        %217 = vmatpush.msra.mxu0 0.0
        %218 = vmatpush.msra.mxu0 0.0
        %219 = vmatpush.msra.mxu0 0.0
        %220 = vmatpush.msra.mxu0 0.0
        %221 = vmatpush.msra.mxu0 0.0
        %222 = vmatpush.msra.mxu0 0.0
        %223 = vmatpush.msra.mxu0 0.0
        %224 = vmatpush.msra.mxu0 0.0
        %225 = vmatpush.msra.mxu0 0.0
        %226 = vmatpush.msra.mxu0 0.0
        %227 = vmatpush.msra.mxu0 0.0
        %228 = vmatpush.msra.mxu0 0.0
        %229 = vmatpush.msra.mxu0 0.0
        %230 = vmatpush.msra.mxu0 0.0
        %231 = vmatpush.msra.mxu0 %v210
        %232 = vmatmul.f32.gmra.mxu0 %v214
        %v233 = vpop.f32.mrf.mxu0
        %v234 = vadd.f32 0.0, %v233
        %235 = vdwg.mxu0
        %236 = vst [vmem:[%s192] sm:$0xf] %v234
        %vm237 = vcmask 11264
        %238 = vst.msk [vmem:[#allocation2] sm:$0xf] %vm237, %v203
        %s239 = sand.u32 %s91, 1
        %s240 = scalar_lea.sflag [#allocation5], %s239
        %s241 = sand.u32 %s91, 1
        %s242 = smul.addr %s241, 4
        %s243 = scalar_lea.vmem [#allocation8], %s242
        // Predicated region
        $region41: #{tpu_custom_call.1} parent=27 // pred_check
          %p244 = pneg %p101
        $region42: #{tpu_custom_call.1} parent=27 // pred_check_branch
          %246 = sbr.rel (%p244) target = $region44
        $region43: #{tpu_custom_call.1} parent=27 // pred_region
          %248 = vsyncadd %s240, 0
          %s249 = sadd.s32 %s25, %s24
          %s250 = smul.addr %s249, 4
          %s251 = scalar_lea.hbm %s2, %s250
          %s253 = sshll.u32 %s243, 4
          %s254 = int_to_ptr.vmem [resolvable:$true] %s253
          %s255 = sshll.u32 %s251, 4
          %s256 = int_to_ptr.hbm [resolvable:$true] %s255
          %258 = dma.vmem_to_hbm [thread:$0]  %s254, 64, %s256, %s240
        $region44: #{tpu_custom_call.1} parent=27 // pred_fallthru
          _
      $region28: #{tpu_custom_call.1} parent=5 // pred_fallthru
        _
      %p259 = scmp.le.s32.totalorder 2, %s15
      // Predicated region
      $region45: #{tpu_custom_call.1} parent=5 // pred_check
        %p260 = pneg %p259
      $region46: #{tpu_custom_call.1} parent=5 // pred_check_branch
        %262 = sbr.rel (%p260) target = $region48
      $region47: #{tpu_custom_call.1} parent=5 // pred_region
        %s263 = ssub.s32 %s15, 2
        // Predicated region
        $region49: #{tpu_custom_call.1} parent=47 // pred_check
          %p264 = pneg %p107
        $region50: #{tpu_custom_call.1} parent=47 // pred_check_branch
          %266 = sbr.rel (%p264) target = $region52
        $region51: #{tpu_custom_call.1} parent=47 // pred_region
          %s267 = sand.u32 %s92, 1
          %s268 = scalar_lea.sflag [#allocation5], %s267
          %s269 = sand.u32 %s92, 1
          %s270 = smul.addr %s269, 4
          %s271 = scalar_lea.vmem [#allocation8], %s270
          %273 = dma.done %s268, 64
        $region52: #{tpu_custom_call.1} parent=47 // pred_fallthru
          _
      $region48: #{tpu_custom_call.1} parent=5 // pred_fallthru
        _
    $region6: #{tpu_custom_call.1} parent=1 // loop_footer
      %s19 = sadd.s32 1, %s15
    $region7: #{tpu_custom_call.1} parent=1 // loop_footer_branch
      %14 = sbr.rel target = $region3
    $region8: #{tpu_custom_call.1} parent=1 // loop_exit
      _
    %274 = vsyncpa [#allocation4], 1
    %s275 = scalar_lea.sflag [#allocation4], 1
    %276 = vsyncpa %s275, 1
    %277 = vsyncpa [#allocation7], 1
    %278 = vsyncpa [#allocation5], 1
    %s279 = scalar_lea.sflag [#allocation5], 1
    %280 = vsyncpa %s279, 1

</llo_original>
